<compile_context>
chip_gen: v7x
topology: tpu7x:2x2x1
jax: 0.10.0
libtpu: 0.0.40
codegen_flags: <defaults>
</compile_context>

<pallas_src>
import functools

import jax
import jax.numpy as jnp
from jax.experimental import pallas as pl
from jax.experimental.pallas import tpu as pltpu


def _round_up(n, m):
    return ((n + m - 1) // m) * m


def _lstm_recurrent_kernel(xp_ref, whh_ref, wfc_ref, bfc_ref, out_ref, *,
                           hidden_dim, seq_len):
    """Full LSTM recurrence + fc + sigmoid for one batch block.

    xp_ref : (T, B_blk, 4H) f32   precomputed x @ W_ih^T + bias (time-major)
    whh_ref: (H, 4H)              recurrent weights (bf16 or f32)
    wfc_ref: (H, O_pad)           fc weights (lane-padded)
    bfc_ref: (1, O_pad) f32       fc bias (lane-padded)
    out_ref: (B_blk, O_pad) f32   sigmoid(fc(h_T))
    """
    H = hidden_dim
    b_blk = xp_ref.shape[1]

    whh = whh_ref[...]            # hoisted: loaded once, reused every step
    cdt = whh.dtype               # matmul-operand dtype (bf16 or f32)

    # State stays f32 and vreg-resident across the whole recurrence.
    h = jnp.zeros((b_blk, H), jnp.float32)
    c = jnp.zeros((b_blk, H), jnp.float32)

    def step(t, h, c):
        # gates = x_proj[t] + h_prev @ W_hh^T  (bias already folded into x_proj)
        gates = xp_ref[t] + jnp.dot(h.astype(cdt), whh,
                                    preferred_element_type=jnp.float32)
        i_g = jax.nn.sigmoid(gates[:, 0 * H:1 * H])
        f_g = jax.nn.sigmoid(gates[:, 1 * H:2 * H])
        g_g = jnp.tanh(gates[:, 2 * H:3 * H])
        o_g = jax.nn.sigmoid(gates[:, 3 * H:4 * H])
        c_new = f_g * c + i_g * g_g
        h_new = o_g * jnp.tanh(c_new)
        return h_new, c_new

    if seq_len <= 32:
        # Small static trip count: full unroll -> straight-line code.
        for t in range(seq_len):
            h, c = step(t, h, c)
    else:
        # Long sequences: rolled loop, dynamic leading-axis index into xp_ref.
        h, c = jax.lax.fori_loop(
            0, seq_len, lambda t, hc: step(t, hc[0], hc[1]), (h, c))

    # Dropout(p=0.5) on the last hidden state is identity in eval mode.
    # TODO(synk): training-mode dropout (p=0.5) not implemented; eval-mode only.
    logits = jnp.dot(h.astype(wfc_ref.dtype), wfc_ref[...],
                     preferred_element_type=jnp.float32) + bfc_ref[...]
    out_ref[...] = jax.nn.sigmoid(logits)


def lstm_classifier_forward(x, params, *, compute_dtype=jnp.bfloat16):
    """x: (B, T, D) float32, batch_first like PyTorch. Returns (B, O) float32."""
    B, T, D = x.shape
    wih_t = params["wih_t"]            # (D, 4H)
    whh_t = params["whh_t"]            # (H, 4H)
    bias = params["bias"]              # (1, 4H) == b_ih + b_hh
    wfc_t = params["wfc_t"]            # (H, O)
    bfc = params["bfc"]                # (1, O)
    H = whh_t.shape[0]
    G = 4 * H
    O = wfc_t.shape[1]

    # Hoisted input projection: one big matmul, bias folded in, output already
    # time-major (the einsum absorbs the batch-first -> time-major layout
    # change; there is no separate transpose pass over x). f32 accumulation.
    xp = jnp.einsum("btd,dg->tbg",
                    x.astype(compute_dtype), wih_t.astype(compute_dtype),
                    preferred_element_type=jnp.float32) + bias        # (T, B, G)

    # Pad batch to a sublane multiple and block it so large batches shard
    # across TensorCores (v7x) via the "parallel" grid axis.
    b_blk = min(_round_up(B, 8), 128)
    b_pad = _round_up(B, b_blk)
    if b_pad != B:
        xp = jnp.pad(xp, ((0, 0), (0, b_pad - B), (0, 0)))
    nb = b_pad // b_blk

    # Lane-dense fc output: pad O (and the fc weights/bias) to a 128 multiple.
    o_pad = _round_up(O, 128)
    wfc_p = jnp.pad(wfc_t, ((0, 0), (0, o_pad - O))).astype(compute_dtype)
    bfc_p = jnp.pad(bfc, ((0, 0), (0, o_pad - O)))           # bias stays f32
    whh_c = whh_t.astype(compute_dtype)

    kernel = functools.partial(_lstm_recurrent_kernel, hidden_dim=H, seq_len=T)

    # NOTE: for very large H, keep weights bf16 (default here), tile the 4H
    # gate dim of W_hh with an inner accumulate and/or pass the weights
    # unblocked (memory_space=pltpu.MemorySpace.VMEM, single-buffered), and
    # set vmem_limit_bytes in CompilerParams to fit v7x's 64 MiB VMEM.
    out_p = pl.pallas_call(
        kernel,
        out_shape=jax.ShapeDtypeStruct((b_pad, o_pad), jnp.float32),
        grid_spec=pltpu.PrefetchScalarGridSpec(
            num_scalar_prefetch=0,
            grid=(nb,),                                    # batch blocks only
            in_specs=[
                pl.BlockSpec((T, b_blk, G), lambda b: (0, b, 0)),   # x_proj
                pl.BlockSpec((H, G), lambda b: (0, 0)),             # W_hh^T
                pl.BlockSpec((H, o_pad), lambda b: (0, 0)),         # W_fc^T
                pl.BlockSpec((1, o_pad), lambda b: (0, 0)),         # b_fc
            ],
            out_specs=pl.BlockSpec((b_blk, o_pad), lambda b: (b, 0)),
        ),
        compiler_params=pltpu.CompilerParams(
            dimension_semantics=("parallel",)),   # v7x: blocks split across TCs
    )(xp, whh_c, wfc_p, bfc_p)

    return out_p[:B, :O]


def init_params(key, input_dim, hidden_dim, output_dim):
    """Deterministic init matching PyTorch shapes (uniform(-1/sqrt(H), 1/sqrt(H)))."""
    ks = jax.random.split(key, 6)
    bound = 1.0 / jnp.sqrt(jnp.float32(hidden_dim))
    u = lambda k, shape: jax.random.uniform(k, shape, jnp.float32, -bound, bound)
    w_ih = u(ks[0], (4 * hidden_dim, input_dim))    # PyTorch weight_ih_l0
    w_hh = u(ks[1], (4 * hidden_dim, hidden_dim))   # PyTorch weight_hh_l0
    b_ih = u(ks[2], (4 * hidden_dim,))
    b_hh = u(ks[3], (4 * hidden_dim,))
    w_fc = u(ks[4], (output_dim, hidden_dim))       # PyTorch fc.weight
    b_fc = u(ks[5], (output_dim,))
    return {
        "wih_t": w_ih.T,                                   # (D, 4H)
        "whh_t": w_hh.T,                                   # (H, 4H)
        "bias": (b_ih + b_hh).reshape(1, 4 * hidden_dim),  # (1, 4H)
        "wfc_t": w_fc.T,                                   # (H, O)
        "bfc": b_fc.reshape(1, output_dim),                # (1, O)
    }


def reference_forward(x, params, hidden_dim):
    """Pure-JAX f32 reference of the same math, for a correctness check."""
    B, T, D = x.shape
    H = hidden_dim
    h = jnp.zeros((B, H), jnp.float32)
    c = jnp.zeros((B, H), jnp.float32)
    for t in range(T):
        gates = x[:, t, :] @ params["wih_t"] + h @ params["whh_t"] + params["bias"]
        i = jax.nn.sigmoid(gates[:, 0 * H:1 * H])
        f = jax.nn.sigmoid(gates[:, 1 * H:2 * H])
        g = jnp.tanh(gates[:, 2 * H:3 * H])
        o = jax.nn.sigmoid(gates[:, 3 * H:4 * H])
        c = f * c + i * g
        h = o * jnp.tanh(c)
    return jax.nn.sigmoid(h @ params["wfc_t"] + params["bfc"])


if __name__ == "__main__":
    B, T, D, H, O = 2, 8, 16, 32, 4

    key = jax.random.PRNGKey(0)
    k_x, k_p = jax.random.split(key)
    x = jax.random.normal(k_x, (B, T, D), dtype=jnp.float32)
    params = init_params(k_p, D, H, O)

    ref = reference_forward(x, params, H)

    # Exact f32 path: must match the pure-JAX reference tightly.
    fwd_exact = jax.jit(
        lambda xx: lstm_classifier_forward(xx, params, compute_dtype=jnp.float32))
    out_f32 = jax.block_until_ready(fwd_exact(x))
    assert out_f32.shape == (B, O)
    assert jnp.allclose(out_f32, ref, atol=1e-5, rtol=1e-5), (out_f32, ref)

    # Default fast path: bf16 matmul operands, f32 state/accumulation.
    fwd_fast = jax.jit(
        lambda xx: lstm_classifier_forward(xx, params, compute_dtype=jnp.bfloat16))
    out_bf16 = jax.block_until_ready(fwd_fast(x))
    assert out_bf16.shape == (B, O)
    assert jnp.allclose(out_bf16, ref, atol=3e-2), (out_bf16, ref)

    print("KERNEL_OK")
</pallas_src>

<mosaic_0001>
module attributes {stable_mosaic.version = 11 : i64} {
  func.func @_lstm_recurrent_kernel(%arg0: i32, %arg1: memref<8x8x128xf32, #tpu.memory_space<vmem>>, %arg2: memref<32x128xf32, #tpu.memory_space<vmem>>, %arg3: memref<32x128xf32, #tpu.memory_space<vmem>>, %arg4: memref<1x128xf32, #tpu.memory_space<vmem>>, %arg5: memref<8x128xf32, #tpu.memory_space<vmem>>) attributes {dimension_semantics = [#tpu.dimension_semantics<parallel>], iteration_bounds = array<i64: 1>, scalar_prefetch = 0 : i64, scratch_operands = 0 : i64, tpu.core_type = #tpu.core_type<tc>, window_params = [{transform_indices = @transform_0, window_bounds = array<i64: 8, 8, 128>}, {pipeline_mode = #tpu.pipeline_mode<synchronous>, transform_indices = @transform_1, window_bounds = array<i64: 32, 128>}, {pipeline_mode = #tpu.pipeline_mode<synchronous>, transform_indices = @transform_2, window_bounds = array<i64: 32, 128>}, {pipeline_mode = #tpu.pipeline_mode<synchronous>, transform_indices = @transform_3, window_bounds = array<i64: 1, 128>}, {transform_indices = @transform_4, window_bounds = array<i64: 8, 128>}]} {
    %c0 = arith.constant 0 : index
    %c0_0 = arith.constant 0 : index
    %0 = vector.load %arg2[%c0, %c0_0] : memref<32x128xf32, #tpu.memory_space<vmem>>, vector<32x128xf32>
    %cst = arith.constant 0.000000e+00 : f32
    %1 = vector.broadcast %cst : f32 to vector<8x32xf32>
    %cst_1 = arith.constant 0.000000e+00 : f32
    %2 = vector.broadcast %cst_1 : f32 to vector<8x32xf32>
    %c0_2 = arith.constant 0 : index
    %c0_3 = arith.constant 0 : index
    %c0_4 = arith.constant 0 : index
    %3 = vector.load %arg1[%c0_2, %c0_3, %c0_4] : memref<8x8x128xf32, #tpu.memory_space<vmem>>, vector<1x8x128xf32>
    %4 = vector.shape_cast %3 : vector<1x8x128xf32> to vector<8x128xf32>
    %cst_5 = arith.constant dense<0.000000e+00> : vector<8x128xf32>
    %5 = tpu.matmul %1, %0, %cst_5 {dimension_numbers = #tpu.dot_dimension_numbers<[1], [0], [0], [1], [0, 0, 1, 1], [], []>} : vector<8x32xf32>, vector<32x128xf32>, vector<8x128xf32> -> vector<8x128xf32>
    %6 = arith.addf %4, %5 : vector<8x128xf32>
    %7 = vector.extract_strided_slice %6 {offsets = [0, 0], sizes = [8, 32], strides = [1, 1]} : vector<8x128xf32> to vector<8x32xf32>
    %8 = arith.negf %7 : vector<8x32xf32>
    %9 = math.exp %8 : vector<8x32xf32>
    %cst_6 = arith.constant 1.000000e+00 : f32
    %10 = vector.broadcast %cst_6 : f32 to vector<8x32xf32>
    %11 = arith.addf %10, %9 : vector<8x32xf32>
    %12 = arith.divf %10, %11 : vector<8x32xf32>
    %13 = vector.extract_strided_slice %6 {offsets = [0, 32], sizes = [8, 32], strides = [1, 1]} : vector<8x128xf32> to vector<8x32xf32>
    %14 = arith.negf %13 : vector<8x32xf32>
    %15 = math.exp %14 : vector<8x32xf32>
    %cst_7 = arith.constant 1.000000e+00 : f32
    %16 = vector.broadcast %cst_7 : f32 to vector<8x32xf32>
    %17 = arith.addf %16, %15 : vector<8x32xf32>
    %18 = arith.divf %16, %17 : vector<8x32xf32>
    %19 = vector.extract_strided_slice %6 {offsets = [0, 64], sizes = [8, 32], strides = [1, 1]} : vector<8x128xf32> to vector<8x32xf32>
    %20 = math.tanh %19 : vector<8x32xf32>
    %21 = vector.extract_strided_slice %6 {offsets = [0, 96], sizes = [8, 32], strides = [1, 1]} : vector<8x128xf32> to vector<8x32xf32>
    %22 = arith.negf %21 : vector<8x32xf32>
    %23 = math.exp %22 : vector<8x32xf32>
    %cst_8 = arith.constant 1.000000e+00 : f32
    %24 = vector.broadcast %cst_8 : f32 to vector<8x32xf32>
    %25 = arith.addf %24, %23 : vector<8x32xf32>
    %26 = arith.divf %24, %25 : vector<8x32xf32>
    %27 = arith.mulf %18, %2 : vector<8x32xf32>
    %28 = arith.mulf %12, %20 : vector<8x32xf32>
    %29 = arith.addf %27, %28 : vector<8x32xf32>
    %30 = math.tanh %29 : vector<8x32xf32>
    %31 = arith.mulf %26, %30 : vector<8x32xf32>
    %c1 = arith.constant 1 : index
    %c0_9 = arith.constant 0 : index
    %c0_10 = arith.constant 0 : index
    %32 = vector.load %arg1[%c1, %c0_9, %c0_10] : memref<8x8x128xf32, #tpu.memory_space<vmem>>, vector<1x8x128xf32>
    %33 = vector.shape_cast %32 : vector<1x8x128xf32> to vector<8x128xf32>
    %cst_11 = arith.constant dense<0.000000e+00> : vector<8x128xf32>
    %34 = tpu.matmul %31, %0, %cst_11 {dimension_numbers = #tpu.dot_dimension_numbers<[1], [0], [0], [1], [0, 0, 1, 1], [], []>} : vector<8x32xf32>, vector<32x128xf32>, vector<8x128xf32> -> vector<8x128xf32>
    %35 = arith.addf %33, %34 : vector<8x128xf32>
    %36 = vector.extract_strided_slice %35 {offsets = [0, 0], sizes = [8, 32], strides = [1, 1]} : vector<8x128xf32> to vector<8x32xf32>
    %37 = arith.negf %36 : vector<8x32xf32>
    %38 = math.exp %37 : vector<8x32xf32>
    %cst_12 = arith.constant 1.000000e+00 : f32
    %39 = vector.broadcast %cst_12 : f32 to vector<8x32xf32>
    %40 = arith.addf %39, %38 : vector<8x32xf32>
    %41 = arith.divf %39, %40 : vector<8x32xf32>
    %42 = vector.extract_strided_slice %35 {offsets = [0, 32], sizes = [8, 32], strides = [1, 1]} : vector<8x128xf32> to vector<8x32xf32>
    %43 = arith.negf %42 : vector<8x32xf32>
    %44 = math.exp %43 : vector<8x32xf32>
    %cst_13 = arith.constant 1.000000e+00 : f32
    %45 = vector.broadcast %cst_13 : f32 to vector<8x32xf32>
    %46 = arith.addf %45, %44 : vector<8x32xf32>
    %47 = arith.divf %45, %46 : vector<8x32xf32>
    %48 = vector.extract_strided_slice %35 {offsets = [0, 64], sizes = [8, 32], strides = [1, 1]} : vector<8x128xf32> to vector<8x32xf32>
    %49 = math.tanh %48 : vector<8x32xf32>
    %50 = vector.extract_strided_slice %35 {offsets = [0, 96], sizes = [8, 32], strides = [1, 1]} : vector<8x128xf32> to vector<8x32xf32>
    %51 = arith.negf %50 : vector<8x32xf32>
    %52 = math.exp %51 : vector<8x32xf32>
    %cst_14 = arith.constant 1.000000e+00 : f32
    %53 = vector.broadcast %cst_14 : f32 to vector<8x32xf32>
    %54 = arith.addf %53, %52 : vector<8x32xf32>
    %55 = arith.divf %53, %54 : vector<8x32xf32>
    %56 = arith.mulf %47, %29 : vector<8x32xf32>
    %57 = arith.mulf %41, %49 : vector<8x32xf32>
    %58 = arith.addf %56, %57 : vector<8x32xf32>
    %59 = math.tanh %58 : vector<8x32xf32>
    %60 = arith.mulf %55, %59 : vector<8x32xf32>
    %c2 = arith.constant 2 : index
    %c0_15 = arith.constant 0 : index
    %c0_16 = arith.constant 0 : index
    %61 = vector.load %arg1[%c2, %c0_15, %c0_16] : memref<8x8x128xf32, #tpu.memory_space<vmem>>, vector<1x8x128xf32>
    %62 = vector.shape_cast %61 : vector<1x8x128xf32> to vector<8x128xf32>
    %cst_17 = arith.constant dense<0.000000e+00> : vector<8x128xf32>
    %63 = tpu.matmul %60, %0, %cst_17 {dimension_numbers = #tpu.dot_dimension_numbers<[1], [0], [0], [1], [0, 0, 1, 1], [], []>} : vector<8x32xf32>, vector<32x128xf32>, vector<8x128xf32> -> vector<8x128xf32>
    %64 = arith.addf %62, %63 : vector<8x128xf32>
    %65 = vector.extract_strided_slice %64 {offsets = [0, 0], sizes = [8, 32], strides = [1, 1]} : vector<8x128xf32> to vector<8x32xf32>
    %66 = arith.negf %65 : vector<8x32xf32>
    %67 = math.exp %66 : vector<8x32xf32>
    %cst_18 = arith.constant 1.000000e+00 : f32
    %68 = vector.broadcast %cst_18 : f32 to vector<8x32xf32>
    %69 = arith.addf %68, %67 : vector<8x32xf32>
    %70 = arith.divf %68, %69 : vector<8x32xf32>
    %71 = vector.extract_strided_slice %64 {offsets = [0, 32], sizes = [8, 32], strides = [1, 1]} : vector<8x128xf32> to vector<8x32xf32>
    %72 = arith.negf %71 : vector<8x32xf32>
    %73 = math.exp %72 : vector<8x32xf32>
    %cst_19 = arith.constant 1.000000e+00 : f32
    %74 = vector.broadcast %cst_19 : f32 to vector<8x32xf32>
    %75 = arith.addf %74, %73 : vector<8x32xf32>
    %76 = arith.divf %74, %75 : vector<8x32xf32>
    %77 = vector.extract_strided_slice %64 {offsets = [0, 64], sizes = [8, 32], strides = [1, 1]} : vector<8x128xf32> to vector<8x32xf32>
    %78 = math.tanh %77 : vector<8x32xf32>
    %79 = vector.extract_strided_slice %64 {offsets = [0, 96], sizes = [8, 32], strides = [1, 1]} : vector<8x128xf32> to vector<8x32xf32>
    %80 = arith.negf %79 : vector<8x32xf32>
    %81 = math.exp %80 : vector<8x32xf32>
    %cst_20 = arith.constant 1.000000e+00 : f32
    %82 = vector.broadcast %cst_20 : f32 to vector<8x32xf32>
    %83 = arith.addf %82, %81 : vector<8x32xf32>
    %84 = arith.divf %82, %83 : vector<8x32xf32>
    %85 = arith.mulf %76, %58 : vector<8x32xf32>
    %86 = arith.mulf %70, %78 : vector<8x32xf32>
    %87 = arith.addf %85, %86 : vector<8x32xf32>
    %88 = math.tanh %87 : vector<8x32xf32>
    %89 = arith.mulf %84, %88 : vector<8x32xf32>
    %c3 = arith.constant 3 : index
    %c0_21 = arith.constant 0 : index
    %c0_22 = arith.constant 0 : index
    %90 = vector.load %arg1[%c3, %c0_21, %c0_22] : memref<8x8x128xf32, #tpu.memory_space<vmem>>, vector<1x8x128xf32>
    %91 = vector.shape_cast %90 : vector<1x8x128xf32> to vector<8x128xf32>
    %cst_23 = arith.constant dense<0.000000e+00> : vector<8x128xf32>
    %92 = tpu.matmul %89, %0, %cst_23 {dimension_numbers = #tpu.dot_dimension_numbers<[1], [0], [0], [1], [0, 0, 1, 1], [], []>} : vector<8x32xf32>, vector<32x128xf32>, vector<8x128xf32> -> vector<8x128xf32>
    %93 = arith.addf %91, %92 : vector<8x128xf32>
    %94 = vector.extract_strided_slice %93 {offsets = [0, 0], sizes = [8, 32], strides = [1, 1]} : vector<8x128xf32> to vector<8x32xf32>
    %95 = arith.negf %94 : vector<8x32xf32>
    %96 = math.exp %95 : vector<8x32xf32>
    %cst_24 = arith.constant 1.000000e+00 : f32
    %97 = vector.broadcast %cst_24 : f32 to vector<8x32xf32>
    %98 = arith.addf %97, %96 : vector<8x32xf32>
    %99 = arith.divf %97, %98 : vector<8x32xf32>
    %100 = vector.extract_strided_slice %93 {offsets = [0, 32], sizes = [8, 32], strides = [1, 1]} : vector<8x128xf32> to vector<8x32xf32>
    %101 = arith.negf %100 : vector<8x32xf32>
    %102 = math.exp %101 : vector<8x32xf32>
    %cst_25 = arith.constant 1.000000e+00 : f32
    %103 = vector.broadcast %cst_25 : f32 to vector<8x32xf32>
    %104 = arith.addf %103, %102 : vector<8x32xf32>
    %105 = arith.divf %103, %104 : vector<8x32xf32>
    %106 = vector.extract_strided_slice %93 {offsets = [0, 64], sizes = [8, 32], strides = [1, 1]} : vector<8x128xf32> to vector<8x32xf32>
    %107 = math.tanh %106 : vector<8x32xf32>
    %108 = vector.extract_strided_slice %93 {offsets = [0, 96], sizes = [8, 32], strides = [1, 1]} : vector<8x128xf32> to vector<8x32xf32>
    %109 = arith.negf %108 : vector<8x32xf32>
    %110 = math.exp %109 : vector<8x32xf32>
    %cst_26 = arith.constant 1.000000e+00 : f32
    %111 = vector.broadcast %cst_26 : f32 to vector<8x32xf32>
    %112 = arith.addf %111, %110 : vector<8x32xf32>
    %113 = arith.divf %111, %112 : vector<8x32xf32>
    %114 = arith.mulf %105, %87 : vector<8x32xf32>
    %115 = arith.mulf %99, %107 : vector<8x32xf32>
    %116 = arith.addf %114, %115 : vector<8x32xf32>
    %117 = math.tanh %116 : vector<8x32xf32>
    %118 = arith.mulf %113, %117 : vector<8x32xf32>
    %c4 = arith.constant 4 : index
    %c0_27 = arith.constant 0 : index
    %c0_28 = arith.constant 0 : index
    %119 = vector.load %arg1[%c4, %c0_27, %c0_28] : memref<8x8x128xf32, #tpu.memory_space<vmem>>, vector<1x8x128xf32>
    %120 = vector.shape_cast %119 : vector<1x8x128xf32> to vector<8x128xf32>
    %cst_29 = arith.constant dense<0.000000e+00> : vector<8x128xf32>
    %121 = tpu.matmul %118, %0, %cst_29 {dimension_numbers = #tpu.dot_dimension_numbers<[1], [0], [0], [1], [0, 0, 1, 1], [], []>} : vector<8x32xf32>, vector<32x128xf32>, vector<8x128xf32> -> vector<8x128xf32>
    %122 = arith.addf %120, %121 : vector<8x128xf32>
    %123 = vector.extract_strided_slice %122 {offsets = [0, 0], sizes = [8, 32], strides = [1, 1]} : vector<8x128xf32> to vector<8x32xf32>
    %124 = arith.negf %123 : vector<8x32xf32>
    %125 = math.exp %124 : vector<8x32xf32>
    %cst_30 = arith.constant 1.000000e+00 : f32
    %126 = vector.broadcast %cst_30 : f32 to vector<8x32xf32>
    %127 = arith.addf %126, %125 : vector<8x32xf32>
    %128 = arith.divf %126, %127 : vector<8x32xf32>
    %129 = vector.extract_strided_slice %122 {offsets = [0, 32], sizes = [8, 32], strides = [1, 1]} : vector<8x128xf32> to vector<8x32xf32>
    %130 = arith.negf %129 : vector<8x32xf32>
    %131 = math.exp %130 : vector<8x32xf32>
    %cst_31 = arith.constant 1.000000e+00 : f32
    %132 = vector.broadcast %cst_31 : f32 to vector<8x32xf32>
    %133 = arith.addf %132, %131 : vector<8x32xf32>
    %134 = arith.divf %132, %133 : vector<8x32xf32>
    %135 = vector.extract_strided_slice %122 {offsets = [0, 64], sizes = [8, 32], strides = [1, 1]} : vector<8x128xf32> to vector<8x32xf32>
    %136 = math.tanh %135 : vector<8x32xf32>
    %137 = vector.extract_strided_slice %122 {offsets = [0, 96], sizes = [8, 32], strides = [1, 1]} : vector<8x128xf32> to vector<8x32xf32>
    %138 = arith.negf %137 : vector<8x32xf32>
    %139 = math.exp %138 : vector<8x32xf32>
    %cst_32 = arith.constant 1.000000e+00 : f32
    %140 = vector.broadcast %cst_32 : f32 to vector<8x32xf32>
    %141 = arith.addf %140, %139 : vector<8x32xf32>
    %142 = arith.divf %140, %141 : vector<8x32xf32>
    %143 = arith.mulf %134, %116 : vector<8x32xf32>
    %144 = arith.mulf %128, %136 : vector<8x32xf32>
    %145 = arith.addf %143, %144 : vector<8x32xf32>
    %146 = math.tanh %145 : vector<8x32xf32>
    %147 = arith.mulf %142, %146 : vector<8x32xf32>
    %c5 = arith.constant 5 : index
    %c0_33 = arith.constant 0 : index
    %c0_34 = arith.constant 0 : index
    %148 = vector.load %arg1[%c5, %c0_33, %c0_34] : memref<8x8x128xf32, #tpu.memory_space<vmem>>, vector<1x8x128xf32>
    %149 = vector.shape_cast %148 : vector<1x8x128xf32> to vector<8x128xf32>
    %cst_35 = arith.constant dense<0.000000e+00> : vector<8x128xf32>
    %150 = tpu.matmul %147, %0, %cst_35 {dimension_numbers = #tpu.dot_dimension_numbers<[1], [0], [0], [1], [0, 0, 1, 1], [], []>} : vector<8x32xf32>, vector<32x128xf32>, vector<8x128xf32> -> vector<8x128xf32>
    %151 = arith.addf %149, %150 : vector<8x128xf32>
    %152 = vector.extract_strided_slice %151 {offsets = [0, 0], sizes = [8, 32], strides = [1, 1]} : vector<8x128xf32> to vector<8x32xf32>
    %153 = arith.negf %152 : vector<8x32xf32>
    %154 = math.exp %153 : vector<8x32xf32>
    %cst_36 = arith.constant 1.000000e+00 : f32
    %155 = vector.broadcast %cst_36 : f32 to vector<8x32xf32>
    %156 = arith.addf %155, %154 : vector<8x32xf32>
    %157 = arith.divf %155, %156 : vector<8x32xf32>
    %158 = vector.extract_strided_slice %151 {offsets = [0, 32], sizes = [8, 32], strides = [1, 1]} : vector<8x128xf32> to vector<8x32xf32>
    %159 = arith.negf %158 : vector<8x32xf32>
    %160 = math.exp %159 : vector<8x32xf32>
    %cst_37 = arith.constant 1.000000e+00 : f32
    %161 = vector.broadcast %cst_37 : f32 to vector<8x32xf32>
    %162 = arith.addf %161, %160 : vector<8x32xf32>
    %163 = arith.divf %161, %162 : vector<8x32xf32>
    %164 = vector.extract_strided_slice %151 {offsets = [0, 64], sizes = [8, 32], strides = [1, 1]} : vector<8x128xf32> to vector<8x32xf32>
    %165 = math.tanh %164 : vector<8x32xf32>
    %166 = vector.extract_strided_slice %151 {offsets = [0, 96], sizes = [8, 32], strides = [1, 1]} : vector<8x128xf32> to vector<8x32xf32>
    %167 = arith.negf %166 : vector<8x32xf32>
    %168 = math.exp %167 : vector<8x32xf32>
    %cst_38 = arith.constant 1.000000e+00 : f32
    %169 = vector.broadcast %cst_38 : f32 to vector<8x32xf32>
    %170 = arith.addf %169, %168 : vector<8x32xf32>
    %171 = arith.divf %169, %170 : vector<8x32xf32>
    %172 = arith.mulf %163, %145 : vector<8x32xf32>
    %173 = arith.mulf %157, %165 : vector<8x32xf32>
    %174 = arith.addf %172, %173 : vector<8x32xf32>
    %175 = math.tanh %174 : vector<8x32xf32>
    %176 = arith.mulf %171, %175 : vector<8x32xf32>
    %c6 = arith.constant 6 : index
    %c0_39 = arith.constant 0 : index
    %c0_40 = arith.constant 0 : index
    %177 = vector.load %arg1[%c6, %c0_39, %c0_40] : memref<8x8x128xf32, #tpu.memory_space<vmem>>, vector<1x8x128xf32>
    %178 = vector.shape_cast %177 : vector<1x8x128xf32> to vector<8x128xf32>
    %cst_41 = arith.constant dense<0.000000e+00> : vector<8x128xf32>
    %179 = tpu.matmul %176, %0, %cst_41 {dimension_numbers = #tpu.dot_dimension_numbers<[1], [0], [0], [1], [0, 0, 1, 1], [], []>} : vector<8x32xf32>, vector<32x128xf32>, vector<8x128xf32> -> vector<8x128xf32>
    %180 = arith.addf %178, %179 : vector<8x128xf32>
    %181 = vector.extract_strided_slice %180 {offsets = [0, 0], sizes = [8, 32], strides = [1, 1]} : vector<8x128xf32> to vector<8x32xf32>
    %182 = arith.negf %181 : vector<8x32xf32>
    %183 = math.exp %182 : vector<8x32xf32>
    %cst_42 = arith.constant 1.000000e+00 : f32
    %184 = vector.broadcast %cst_42 : f32 to vector<8x32xf32>
    %185 = arith.addf %184, %183 : vector<8x32xf32>
    %186 = arith.divf %184, %185 : vector<8x32xf32>
    %187 = vector.extract_strided_slice %180 {offsets = [0, 32], sizes = [8, 32], strides = [1, 1]} : vector<8x128xf32> to vector<8x32xf32>
    %188 = arith.negf %187 : vector<8x32xf32>
    %189 = math.exp %188 : vector<8x32xf32>
    %cst_43 = arith.constant 1.000000e+00 : f32
    %190 = vector.broadcast %cst_43 : f32 to vector<8x32xf32>
    %191 = arith.addf %190, %189 : vector<8x32xf32>
    %192 = arith.divf %190, %191 : vector<8x32xf32>
    %193 = vector.extract_strided_slice %180 {offsets = [0, 64], sizes = [8, 32], strides = [1, 1]} : vector<8x128xf32> to vector<8x32xf32>
    %194 = math.tanh %193 : vector<8x32xf32>
    %195 = vector.extract_strided_slice %180 {offsets = [0, 96], sizes = [8, 32], strides = [1, 1]} : vector<8x128xf32> to vector<8x32xf32>
    %196 = arith.negf %195 : vector<8x32xf32>
    %197 = math.exp %196 : vector<8x32xf32>
    %cst_44 = arith.constant 1.000000e+00 : f32
    %198 = vector.broadcast %cst_44 : f32 to vector<8x32xf32>
    %199 = arith.addf %198, %197 : vector<8x32xf32>
    %200 = arith.divf %198, %199 : vector<8x32xf32>
    %201 = arith.mulf %192, %174 : vector<8x32xf32>
    %202 = arith.mulf %186, %194 : vector<8x32xf32>
    %203 = arith.addf %201, %202 : vector<8x32xf32>
    %204 = math.tanh %203 : vector<8x32xf32>
    %205 = arith.mulf %200, %204 : vector<8x32xf32>
    %c7 = arith.constant 7 : index
    %c0_45 = arith.constant 0 : index
    %c0_46 = arith.constant 0 : index
    %206 = vector.load %arg1[%c7, %c0_45, %c0_46] : memref<8x8x128xf32, #tpu.memory_space<vmem>>, vector<1x8x128xf32>
    %207 = vector.shape_cast %206 : vector<1x8x128xf32> to vector<8x128xf32>
    %cst_47 = arith.constant dense<0.000000e+00> : vector<8x128xf32>
    %208 = tpu.matmul %205, %0, %cst_47 {dimension_numbers = #tpu.dot_dimension_numbers<[1], [0], [0], [1], [0, 0, 1, 1], [], []>} : vector<8x32xf32>, vector<32x128xf32>, vector<8x128xf32> -> vector<8x128xf32>
    %209 = arith.addf %207, %208 : vector<8x128xf32>
    %210 = vector.extract_strided_slice %209 {offsets = [0, 0], sizes = [8, 32], strides = [1, 1]} : vector<8x128xf32> to vector<8x32xf32>
    %211 = arith.negf %210 : vector<8x32xf32>
    %212 = math.exp %211 : vector<8x32xf32>
    %cst_48 = arith.constant 1.000000e+00 : f32
    %213 = vector.broadcast %cst_48 : f32 to vector<8x32xf32>
    %214 = arith.addf %213, %212 : vector<8x32xf32>
    %215 = arith.divf %213, %214 : vector<8x32xf32>
    %216 = vector.extract_strided_slice %209 {offsets = [0, 32], sizes = [8, 32], strides = [1, 1]} : vector<8x128xf32> to vector<8x32xf32>
    %217 = arith.negf %216 : vector<8x32xf32>
    %218 = math.exp %217 : vector<8x32xf32>
    %cst_49 = arith.constant 1.000000e+00 : f32
    %219 = vector.broadcast %cst_49 : f32 to vector<8x32xf32>
    %220 = arith.addf %219, %218 : vector<8x32xf32>
    %221 = arith.divf %219, %220 : vector<8x32xf32>
    %222 = vector.extract_strided_slice %209 {offsets = [0, 64], sizes = [8, 32], strides = [1, 1]} : vector<8x128xf32> to vector<8x32xf32>
    %223 = math.tanh %222 : vector<8x32xf32>
    %224 = vector.extract_strided_slice %209 {offsets = [0, 96], sizes = [8, 32], strides = [1, 1]} : vector<8x128xf32> to vector<8x32xf32>
    %225 = arith.negf %224 : vector<8x32xf32>
    %226 = math.exp %225 : vector<8x32xf32>
    %cst_50 = arith.constant 1.000000e+00 : f32
    %227 = vector.broadcast %cst_50 : f32 to vector<8x32xf32>
    %228 = arith.addf %227, %226 : vector<8x32xf32>
    %229 = arith.divf %227, %228 : vector<8x32xf32>
    %230 = arith.mulf %221, %203 : vector<8x32xf32>
    %231 = arith.mulf %215, %223 : vector<8x32xf32>
    %232 = arith.addf %230, %231 : vector<8x32xf32>
    %233 = math.tanh %232 : vector<8x32xf32>
    %234 = arith.mulf %229, %233 : vector<8x32xf32>
    %c0_51 = arith.constant 0 : index
    %c0_52 = arith.constant 0 : index
    %235 = vector.load %arg3[%c0_51, %c0_52] : memref<32x128xf32, #tpu.memory_space<vmem>>, vector<32x128xf32>
    %cst_53 = arith.constant dense<0.000000e+00> : vector<8x128xf32>
    %236 = tpu.matmul %234, %235, %cst_53 {dimension_numbers = #tpu.dot_dimension_numbers<[1], [0], [0], [1], [0, 0, 1, 1], [], []>} : vector<8x32xf32>, vector<32x128xf32>, vector<8x128xf32> -> vector<8x128xf32>
    %c0_54 = arith.constant 0 : index
    %c0_55 = arith.constant 0 : index
    %237 = vector.load %arg4[%c0_54, %c0_55] : memref<1x128xf32, #tpu.memory_space<vmem>>, vector<1x128xf32>
    %238 = vector.broadcast %237 : vector<1x128xf32> to vector<8x128xf32>
    %239 = arith.addf %236, %238 : vector<8x128xf32>
    %240 = arith.negf %239 : vector<8x128xf32>
    %241 = math.exp %240 : vector<8x128xf32>
    %cst_56 = arith.constant 1.000000e+00 : f32
    %242 = vector.broadcast %cst_56 : f32 to vector<8x128xf32>
    %243 = arith.addf %242, %241 : vector<8x128xf32>
    %244 = arith.divf %242, %243 : vector<8x128xf32>
    %c0_57 = arith.constant 0 : index
    %c0_58 = arith.constant 0 : index
    %245 = vector.load %arg5[%c0_57, %c0_58] : memref<8x128xf32, #tpu.memory_space<vmem>>, vector<8x128xf32>
    tpu.vector_store %arg5[%c0_57, %c0_58], %244 {strides = array<i32>} : memref<8x128xf32, #tpu.memory_space<vmem>>, vector<8x128xf32>,
    return
  }
  func.func @transform_0(%arg0: i32) -> (i32, i32, i32) {
    %c0_i32 = arith.constant 0 : i32
    %c0_i32_0 = arith.constant 0 : i32
    %c0_i32_1 = arith.constant 0 : i32
    return %c0_i32, %arg0, %c0_i32_0 : i32, i32, i32
  }
  func.func @transform_1(%arg0: i32) -> (i32, i32) {
    %c0_i32 = arith.constant 0 : i32
    %c0_i32_0 = arith.constant 0 : i32
    %c0_i32_1 = arith.constant 0 : i32
    return %c0_i32, %c0_i32_0 : i32, i32
  }
  func.func @transform_2(%arg0: i32) -> (i32, i32) {
    %c0_i32 = arith.constant 0 : i32
    %c0_i32_0 = arith.constant 0 : i32
    %c0_i32_1 = arith.constant 0 : i32
    return %c0_i32, %c0_i32_0 : i32, i32
  }
  func.func @transform_3(%arg0: i32) -> (i32, i32) {
    %c0_i32 = arith.constant 0 : i32
    %c0_i32_0 = arith.constant 0 : i32
    %c0_i32_1 = arith.constant 0 : i32
    return %c0_i32, %c0_i32_0 : i32, i32
  }
  func.func @transform_4(%arg0: i32) -> (i32, i32) {
    %c0_i32 = arith.constant 0 : i32
    %c0_i32_0 = arith.constant 0 : i32
    return %arg0, %c0_i32 : i32, i32
  }
}

</mosaic_0001>

<llo_original>
// kernel: _lambda_.1
$region0: #{_lambda_.1}
  #allocation0 [shape = 'u32[]', space=smem, size = 0x4, offset = 0x4, fixed_abs, tag = 'smem constant byte address 0x4 - core index']
  #allocation1 [shape = 'u32[144,128]{1,0:T(1,128)}', space=vmem, size = 0x12000, scoped, tag = 'internal scratch']
  %s0 = inlined_call_operand.vmem [shape: f32[8,8,128], index: 0, kind: input, shape index: {}]
  %s1 = inlined_call_operand.vmem [shape: f32[32,128], index: 1, kind: input, shape index: {}]
  %s2 = inlined_call_operand.vmem [shape: f32[32,128], index: 2, kind: input, shape index: {}]
  %s3 = inlined_call_operand.vmem [shape: f32[1,128], index: 3, kind: input, shape index: {}]
  %s4 = inlined_call_operand.vmem [shape: f32[8,128], index: 4, kind: output, shape index: {}]
  %s5 = sld [smem:[#allocation0]]
  $region26: #{_lambda_.1} parent=0
    _
  %s7 = ssub.s32 1, %s5
  %s8 = scalar_select 0, %s7, %s5
  // Predicated region
  $region2: #{_lambda_.1} parent=0 // pred_check
    _
  $region3: #{_lambda_.1} parent=0 // pred_check_branch
    %10 = sbr.rel (0) target = $region5
  $region4: #{_lambda_.1} parent=0 // pred_region
    _
  $region5: #{_lambda_.1} parent=0 // pred_fallthru
    _
  // Predicated region
  $region6: #{_lambda_.1} parent=0 // pred_check
    _
  $region7: #{_lambda_.1} parent=0 // pred_check_branch
    %12 = sbr.rel (0) target = $region9
  $region8: #{_lambda_.1} parent=0 // pred_region
    _
  $region9: #{_lambda_.1} parent=0 // pred_fallthru
    _
  // Predicated region
  $region10: #{_lambda_.1} parent=0 // pred_check
    _
  $region11: #{_lambda_.1} parent=0 // pred_check_branch
    %14 = sbr.rel (0) target = $region13
  $region12: #{_lambda_.1} parent=0 // pred_region
    _
  $region13: #{_lambda_.1} parent=0 // pred_fallthru
    _
  // Predicated region
  $region14: #{_lambda_.1} parent=0 // pred_check
    _
  $region15: #{_lambda_.1} parent=0 // pred_check_branch
    %16 = sbr.rel (0) target = $region17
  $region16: #{_lambda_.1} parent=0 // pred_region
    _
  $region17: #{_lambda_.1} parent=0 // pred_fallthru
    _
  %v17 = vld [vmem:[%s1] sm:$0xff]
  %v18 = vld [vmem:[%s1 + $0x8] sm:$0xff]
  %v19 = vld [vmem:[%s1 + $0x10] sm:$0xff]
  %v20 = vld [vmem:[%s1 + $0x18] sm:$0xff]
  %v21 = vld [vmem:[%s0] sm:$0xff]
  %vm22 = vcmask 261120
  %v24 = vsel %vm22, 0.0, 0
  %26 = vmatprep.subr.mxu0 0.0
  %27 = vmatpush1.msra.mxu0 %v17
  %28 = vmatprep.subr.mxu0 0.0
  %29 = vmatpush1.msra.mxu0 %v18
  %30 = vmatprep.subr.mxu0 0.0
  %31 = vmatpush1.msra.mxu0 %v19
  %32 = vmatprep.subr.mxu0 0.0
  %33 = vmatpush1.msra.mxu0 %v20
  %34 = vmatprep.subr.mxu0 0.0
  %35 = vmatpush1.msra.mxu0 0.0
  %36 = vmatprep.subr.mxu0 0.0
  %37 = vmatpush1.msra.mxu0 0.0
  %38 = vmatprep.subr.mxu0 0.0
  %39 = vmatpush1.msra.mxu0 0.0
  %40 = vmatprep.subr.mxu0 0.0
  %41 = vmatpush1.msra.mxu0 0.0
  %42 = vmatprep.subr.mxu0 0.0
  %43 = vmatpush1.msra.mxu0 0.0
  %44 = vmatprep.subr.mxu0 0.0
  %45 = vmatpush1.msra.mxu0 0.0
  %46 = vmatprep.subr.mxu0 0.0
  %47 = vmatpush1.msra.mxu0 0.0
  %48 = vmatprep.subr.mxu0 0.0
  %49 = vmatpush1.msra.mxu0 0.0
  %50 = vmatprep.subr.mxu0 0.0
  %51 = vmatpush1.msra.mxu0 0.0
  %52 = vmatprep.subr.mxu0 0.0
  %53 = vmatpush1.msra.mxu0 0.0
  %54 = vmatprep.subr.mxu0 0.0
  %55 = vmatpush1.msra.mxu0 0.0
  %56 = vmatprep.subr.mxu0 0.0
  %57 = vmatpush1.msra.mxu0 0.0
  %58 = vmatprep.subr.mxu0 0.0
  %59 = vmatpush1.msra.mxu0 0.0
  %60 = vmatprep.subr.mxu0 0.0
  %61 = vmatpush1.msra.mxu0 0.0
  %62 = vmatprep.subr.mxu0 0.0
  %63 = vmatpush1.msra.mxu0 0.0
  %64 = vmatprep.subr.mxu0 0.0
  %65 = vmatpush1.msra.mxu0 0.0
  %66 = vmatprep.subr.mxu0 0.0
  %67 = vmatpush1.msra.mxu0 0.0
  %68 = vmatprep.subr.mxu0 0.0
  %69 = vmatpush1.msra.mxu0 0.0
  %70 = vmatprep.subr.mxu0 0.0
  %71 = vmatpush1.msra.mxu0 0.0
  %72 = vmatprep.subr.mxu0 0.0
  %73 = vmatpush1.msra.mxu0 0.0
  %74 = vmatprep.subr.mxu0 0.0
  %75 = vmatpush1.msra.mxu0 0.0
  %76 = vmatprep.subr.mxu0 0.0
  %77 = vmatpush1.msra.mxu0 0.0
  %78 = vmatprep.subr.mxu0 0.0
  %79 = vmatpush1.msra.mxu0 0.0
  %80 = vmatprep.subr.mxu0 0.0
  %81 = vmatpush1.msra.mxu0 0.0
  %82 = vmatprep.subr.mxu0 0.0
  %83 = vmatpush1.msra.mxu0 0.0
  %84 = vmatprep.subr.mxu0 0.0
  %85 = vmatpush1.msra.mxu0 0.0
  %86 = vmatprep.subr.mxu0 0.0
  %87 = vmatpush1.msra.mxu0 0.0
  %88 = vmatprep.subr.mxu0 0.0
  %89 = vmatpush1.msra.mxu0 0.0
  %90 = vmatprep.mubr.f32.mxu0 0.0
  %91 = vmatmul.mubr.f32.gmra.mrb[0].mxu0 %v24
  %v92 = vpop.f32.mrb[0].mxu0
  %v93 = vadd.f32 0.0, %v92
  %v94 = vpop.f32.mrb[0].mxu0
  %95 = vdwg.mxu0
  %v96 = vadd.f32 %v21, %v93
  %v97 = vxor.u32 %v96, 2147483648
  %v98 = vmul.f32 %v97, 1.442695
  %v99 = vpow.pop %v98
  %v100 = vadd.f32 %v99, 1.0
  %v101 = vrcp.pop %v100
  %v102 = vmul.f32 1.0, %v101
  %v103 = vtanh.pop %v96
  %v104 = vmul.f32 %v102, 0.0
  %106 = vrot.lane.b32.xlu0 %v103, 64
  %v107 = vpop.permute.xlu0 %106
  %v109 = vmul.f32 %v102, %v107
  %111 = vrot.lane.b32.xlu0 %v109, 32
  %v112 = vpop.permute.xlu0 %111
  %v114 = vadd.f32 %v104, %v112
  %v115 = vtanh.pop %v114
  %117 = vrot.lane.b32.xlu0 %v115, 64
  %v118 = vpop.permute.xlu0 %117
  %v120 = vmul.f32 %v102, %v118
  %s121 = scalar_lea.vmem %s0, 8
  %v122 = vld [vmem:[%s121] sm:$0xff]
  %124 = vrot.lane.b32.xlu0 %v120, 32
  %v125 = vpop.permute.xlu0 %124
  %v126 = vsel %vm22, %v125, 0
  %128 = vmatprep.subr.mxu0 0.0
  %129 = vmatpush1.msra.mxu0 %v17
  %130 = vmatprep.subr.mxu0 0.0
  %131 = vmatpush1.msra.mxu0 %v18
  %132 = vmatprep.subr.mxu0 0.0
  %133 = vmatpush1.msra.mxu0 %v19
  %134 = vmatprep.subr.mxu0 0.0
  %135 = vmatpush1.msra.mxu0 %v20
  %136 = vmatprep.subr.mxu0 0.0
  %137 = vmatpush1.msra.mxu0 0.0
  %138 = vmatprep.subr.mxu0 0.0
  %139 = vmatpush1.msra.mxu0 0.0
  %140 = vmatprep.subr.mxu0 0.0
  %141 = vmatpush1.msra.mxu0 0.0
  %142 = vmatprep.subr.mxu0 0.0
  %143 = vmatpush1.msra.mxu0 0.0
  %144 = vmatprep.subr.mxu0 0.0
  %145 = vmatpush1.msra.mxu0 0.0
  %146 = vmatprep.subr.mxu0 0.0
  %147 = vmatpush1.msra.mxu0 0.0
  %148 = vmatprep.subr.mxu0 0.0
  %149 = vmatpush1.msra.mxu0 0.0
  %150 = vmatprep.subr.mxu0 0.0
  %151 = vmatpush1.msra.mxu0 0.0
  %152 = vmatprep.subr.mxu0 0.0
  %153 = vmatpush1.msra.mxu0 0.0
  %154 = vmatprep.subr.mxu0 0.0
  %155 = vmatpush1.msra.mxu0 0.0
  %156 = vmatprep.subr.mxu0 0.0
  %157 = vmatpush1.msra.mxu0 0.0
  %158 = vmatprep.subr.mxu0 0.0
  %159 = vmatpush1.msra.mxu0 0.0
  %160 = vmatprep.subr.mxu0 0.0
  %161 = vmatpush1.msra.mxu0 0.0
  %162 = vmatprep.subr.mxu0 0.0
  %163 = vmatpush1.msra.mxu0 0.0
  %164 = vmatprep.subr.mxu0 0.0
  %165 = vmatpush1.msra.mxu0 0.0
  %166 = vmatprep.subr.mxu0 0.0
  %167 = vmatpush1.msra.mxu0 0.0
  %168 = vmatprep.subr.mxu0 0.0
  %169 = vmatpush1.msra.mxu0 0.0
  %170 = vmatprep.subr.mxu0 0.0
  %171 = vmatpush1.msra.mxu0 0.0
  %172 = vmatprep.subr.mxu0 0.0
  %173 = vmatpush1.msra.mxu0 0.0
  %174 = vmatprep.subr.mxu0 0.0
  %175 = vmatpush1.msra.mxu0 0.0
  %176 = vmatprep.subr.mxu0 0.0
  %177 = vmatpush1.msra.mxu0 0.0
  %178 = vmatprep.subr.mxu0 0.0
  %179 = vmatpush1.msra.mxu0 0.0
  %180 = vmatprep.subr.mxu0 0.0
  %181 = vmatpush1.msra.mxu0 0.0
  %182 = vmatprep.subr.mxu0 0.0
  %183 = vmatpush1.msra.mxu0 0.0
  %184 = vmatprep.subr.mxu0 0.0
  %185 = vmatpush1.msra.mxu0 0.0
  %186 = vmatprep.subr.mxu0 0.0
  %187 = vmatpush1.msra.mxu0 0.0
  %188 = vmatprep.subr.mxu0 0.0
  %189 = vmatpush1.msra.mxu0 0.0
  %190 = vmatprep.subr.mxu0 0.0
  %191 = vmatpush1.msra.mxu0 0.0
  %192 = vmatprep.mubr.f32.mxu0 0.0
  %193 = vmatmul.mubr.f32.gmra.mrb[0].mxu0 %v126
  %v194 = vpop.f32.mrb[0].mxu0
  %v195 = vadd.f32 0.0, %v194
  %v196 = vpop.f32.mrb[0].mxu0
  %197 = vdwg.mxu0
  %v198 = vadd.f32 %v122, %v195
  %v199 = vxor.u32 %v198, 2147483648
  %v200 = vmul.f32 %v199, 1.442695
  %v201 = vpow.pop %v200
  %v202 = vadd.f32 %v201, 1.0
  %v203 = vrcp.pop %v202
  %v204 = vmul.f32 1.0, %v203
  %v205 = vtanh.pop %v198
  %v206 = vmul.f32 %v204, %v114
  %208 = vrot.lane.b32.xlu0 %v205, 64
  %v209 = vpop.permute.xlu0 %208
  %v211 = vmul.f32 %v204, %v209
  %213 = vrot.lane.b32.xlu0 %v211, 32
  %v214 = vpop.permute.xlu0 %213
  %v216 = vadd.f32 %v206, %v214
  %v217 = vtanh.pop %v216
  %219 = vrot.lane.b32.xlu0 %v217, 64
  %v220 = vpop.permute.xlu0 %219
  %v222 = vmul.f32 %v204, %v220
  %s223 = scalar_lea.vmem %s0, 16
  %v224 = vld [vmem:[%s223] sm:$0xff]
  %226 = vrot.lane.b32.xlu0 %v222, 32
  %v227 = vpop.permute.xlu0 %226
  %v228 = vsel %vm22, %v227, 0
  %230 = vmatprep.subr.mxu0 0.0
  %231 = vmatpush1.msra.mxu0 %v17
  %232 = vmatprep.subr.mxu0 0.0
  %233 = vmatpush1.msra.mxu0 %v18
  %234 = vmatprep.subr.mxu0 0.0
  %235 = vmatpush1.msra.mxu0 %v19
  %236 = vmatprep.subr.mxu0 0.0
  %237 = vmatpush1.msra.mxu0 %v20
  %238 = vmatprep.subr.mxu0 0.0
  %239 = vmatpush1.msra.mxu0 0.0
  %240 = vmatprep.subr.mxu0 0.0
  %241 = vmatpush1.msra.mxu0 0.0
  %242 = vmatprep.subr.mxu0 0.0
  %243 = vmatpush1.msra.mxu0 0.0
  %244 = vmatprep.subr.mxu0 0.0
  %245 = vmatpush1.msra.mxu0 0.0
  %246 = vmatprep.subr.mxu0 0.0
  %247 = vmatpush1.msra.mxu0 0.0
  %248 = vmatprep.subr.mxu0 0.0
  %249 = vmatpush1.msra.mxu0 0.0
  %250 = vmatprep.subr.mxu0 0.0
  %251 = vmatpush1.msra.mxu0 0.0
  %252 = vmatprep.subr.mxu0 0.0
  %253 = vmatpush1.msra.mxu0 0.0
  %254 = vmatprep.subr.mxu0 0.0
  %255 = vmatpush1.msra.mxu0 0.0
  %256 = vmatprep.subr.mxu0 0.0
  %257 = vmatpush1.msra.mxu0 0.0
  %258 = vmatprep.subr.mxu0 0.0
  %259 = vmatpush1.msra.mxu0 0.0
  %260 = vmatprep.subr.mxu0 0.0
  %261 = vmatpush1.msra.mxu0 0.0
  %262 = vmatprep.subr.mxu0 0.0
  %263 = vmatpush1.msra.mxu0 0.0
  %264 = vmatprep.subr.mxu0 0.0
  %265 = vmatpush1.msra.mxu0 0.0
  %266 = vmatprep.subr.mxu0 0.0
  %267 = vmatpush1.msra.mxu0 0.0
  %268 = vmatprep.subr.mxu0 0.0
  %269 = vmatpush1.msra.mxu0 0.0
  %270 = vmatprep.subr.mxu0 0.0
  %271 = vmatpush1.msra.mxu0 0.0
  %272 = vmatprep.subr.mxu0 0.0
  %273 = vmatpush1.msra.mxu0 0.0
  %274 = vmatprep.subr.mxu0 0.0
  %275 = vmatpush1.msra.mxu0 0.0
  %276 = vmatprep.subr.mxu0 0.0
  %277 = vmatpush1.msra.mxu0 0.0
  %278 = vmatprep.subr.mxu0 0.0
  %279 = vmatpush1.msra.mxu0 0.0
  %280 = vmatprep.subr.mxu0 0.0
  %281 = vmatpush1.msra.mxu0 0.0
  %282 = vmatprep.subr.mxu0 0.0
  %283 = vmatpush1.msra.mxu0 0.0
  %284 = vmatprep.subr.mxu0 0.0
  %285 = vmatpush1.msra.mxu0 0.0
  %286 = vmatprep.subr.mxu0 0.0
  %287 = vmatpush1.msra.mxu0 0.0
  %288 = vmatprep.subr.mxu0 0.0
  %289 = vmatpush1.msra.mxu0 0.0
  %290 = vmatprep.subr.mxu0 0.0
  %291 = vmatpush1.msra.mxu0 0.0
  %292 = vmatprep.subr.mxu0 0.0
  %293 = vmatpush1.msra.mxu0 0.0
  %294 = vmatprep.mubr.f32.mxu0 0.0
  %295 = vmatmul.mubr.f32.gmra.mrb[0].mxu0 %v228
  %v296 = vpop.f32.mrb[0].mxu0
  %v297 = vadd.f32 0.0, %v296
  %v298 = vpop.f32.mrb[0].mxu0
  %299 = vdwg.mxu0
  %v300 = vadd.f32 %v224, %v297
  %v301 = vxor.u32 %v300, 2147483648
  %v302 = vmul.f32 %v301, 1.442695
  %v303 = vpow.pop %v302
  %v304 = vadd.f32 %v303, 1.0
  %v305 = vrcp.pop %v304
  %v306 = vmul.f32 1.0, %v305
  %v307 = vtanh.pop %v300
  %v308 = vmul.f32 %v306, %v216
  %310 = vrot.lane.b32.xlu0 %v307, 64
  %v311 = vpop.permute.xlu0 %310
  %v313 = vmul.f32 %v306, %v311
  %315 = vrot.lane.b32.xlu0 %v313, 32
  %v316 = vpop.permute.xlu0 %315
  %v318 = vadd.f32 %v308, %v316
  %v319 = vtanh.pop %v318
  %321 = vrot.lane.b32.xlu0 %v319, 64
  %v322 = vpop.permute.xlu0 %321
  %v324 = vmul.f32 %v306, %v322
  %s325 = scalar_lea.vmem %s0, 24
  %v326 = vld [vmem:[%s325] sm:$0xff]
  %328 = vrot.lane.b32.xlu0 %v324, 32
  %v329 = vpop.permute.xlu0 %328
  %v330 = vsel %vm22, %v329, 0
  %332 = vmatprep.subr.mxu0 0.0
  %333 = vmatpush1.msra.mxu0 %v17
  %334 = vmatprep.subr.mxu0 0.0
  %335 = vmatpush1.msra.mxu0 %v18
  %336 = vmatprep.subr.mxu0 0.0
  %337 = vmatpush1.msra.mxu0 %v19
  %338 = vmatprep.subr.mxu0 0.0
  %339 = vmatpush1.msra.mxu0 %v20
  %340 = vmatprep.subr.mxu0 0.0
  %341 = vmatpush1.msra.mxu0 0.0
  %342 = vmatprep.subr.mxu0 0.0
  %343 = vmatpush1.msra.mxu0 0.0
  %344 = vmatprep.subr.mxu0 0.0
  %345 = vmatpush1.msra.mxu0 0.0
  %346 = vmatprep.subr.mxu0 0.0
  %347 = vmatpush1.msra.mxu0 0.0
  %348 = vmatprep.subr.mxu0 0.0
  %349 = vmatpush1.msra.mxu0 0.0
  %350 = vmatprep.subr.mxu0 0.0
  %351 = vmatpush1.msra.mxu0 0.0
  %352 = vmatprep.subr.mxu0 0.0
  %353 = vmatpush1.msra.mxu0 0.0
  %354 = vmatprep.subr.mxu0 0.0
  %355 = vmatpush1.msra.mxu0 0.0
  %356 = vmatprep.subr.mxu0 0.0
  %357 = vmatpush1.msra.mxu0 0.0
  %358 = vmatprep.subr.mxu0 0.0
  %359 = vmatpush1.msra.mxu0 0.0
  %360 = vmatprep.subr.mxu0 0.0
  %361 = vmatpush1.msra.mxu0 0.0
  %362 = vmatprep.subr.mxu0 0.0
  %363 = vmatpush1.msra.mxu0 0.0
  %364 = vmatprep.subr.mxu0 0.0
  %365 = vmatpush1.msra.mxu0 0.0
  %366 = vmatprep.subr.mxu0 0.0
  %367 = vmatpush1.msra.mxu0 0.0
  %368 = vmatprep.subr.mxu0 0.0
  %369 = vmatpush1.msra.mxu0 0.0
  %370 = vmatprep.subr.mxu0 0.0
  %371 = vmatpush1.msra.mxu0 0.0
  %372 = vmatprep.subr.mxu0 0.0
  %373 = vmatpush1.msra.mxu0 0.0
  %374 = vmatprep.subr.mxu0 0.0
  %375 = vmatpush1.msra.mxu0 0.0
  %376 = vmatprep.subr.mxu0 0.0
  %377 = vmatpush1.msra.mxu0 0.0
  %378 = vmatprep.subr.mxu0 0.0
  %379 = vmatpush1.msra.mxu0 0.0
  %380 = vmatprep.subr.mxu0 0.0
  %381 = vmatpush1.msra.mxu0 0.0
  %382 = vmatprep.subr.mxu0 0.0
  %383 = vmatpush1.msra.mxu0 0.0
  %384 = vmatprep.subr.mxu0 0.0
  %385 = vmatpush1.msra.mxu0 0.0
  %386 = vmatprep.subr.mxu0 0.0
  %387 = vmatpush1.msra.mxu0 0.0
  %388 = vmatprep.subr.mxu0 0.0
  %389 = vmatpush1.msra.mxu0 0.0
  %390 = vmatprep.subr.mxu0 0.0
  %391 = vmatpush1.msra.mxu0 0.0
  %392 = vmatprep.subr.mxu0 0.0
  %393 = vmatpush1.msra.mxu0 0.0
  %394 = vmatprep.subr.mxu0 0.0
  %395 = vmatpush1.msra.mxu0 0.0
  %396 = vmatprep.mubr.f32.mxu0 0.0
  %397 = vmatmul.mubr.f32.gmra.mrb[0].mxu0 %v330
  %v398 = vpop.f32.mrb[0].mxu0
  %v399 = vadd.f32 0.0, %v398
  %v400 = vpop.f32.mrb[0].mxu0
  %401 = vdwg.mxu0
  %v402 = vadd.f32 %v326, %v399
  %v403 = vxor.u32 %v402, 2147483648
  %v404 = vmul.f32 %v403, 1.442695
  %v405 = vpow.pop %v404
  %v406 = vadd.f32 %v405, 1.0
  %v407 = vrcp.pop %v406
  %v408 = vmul.f32 1.0, %v407
  %v409 = vtanh.pop %v402
  %v410 = vmul.f32 %v408, %v318
  %412 = vrot.lane.b32.xlu0 %v409, 64
  %v413 = vpop.permute.xlu0 %412
  %v415 = vmul.f32 %v408, %v413
  %417 = vrot.lane.b32.xlu0 %v415, 32
  %v418 = vpop.permute.xlu0 %417
  %v420 = vadd.f32 %v410, %v418
  %v421 = vtanh.pop %v420
  %423 = vrot.lane.b32.xlu0 %v421, 64
  %v424 = vpop.permute.xlu0 %423
  %v426 = vmul.f32 %v408, %v424
  %s427 = scalar_lea.vmem %s0, 32
  %v428 = vld [vmem:[%s427] sm:$0xff]
  %430 = vrot.lane.b32.xlu0 %v426, 32
  %v431 = vpop.permute.xlu0 %430
  %v432 = vsel %vm22, %v431, 0
  %434 = vmatprep.subr.mxu0 0.0
  %435 = vmatpush1.msra.mxu0 %v17
  %436 = vmatprep.subr.mxu0 0.0
  %437 = vmatpush1.msra.mxu0 %v18
  %438 = vmatprep.subr.mxu0 0.0
  %439 = vmatpush1.msra.mxu0 %v19
  %440 = vmatprep.subr.mxu0 0.0
  %441 = vmatpush1.msra.mxu0 %v20
  %442 = vmatprep.subr.mxu0 0.0
  %443 = vmatpush1.msra.mxu0 0.0
  %444 = vmatprep.subr.mxu0 0.0
  %445 = vmatpush1.msra.mxu0 0.0
  %446 = vmatprep.subr.mxu0 0.0
  %447 = vmatpush1.msra.mxu0 0.0
  %448 = vmatprep.subr.mxu0 0.0
  %449 = vmatpush1.msra.mxu0 0.0
  %450 = vmatprep.subr.mxu0 0.0
  %451 = vmatpush1.msra.mxu0 0.0
  %452 = vmatprep.subr.mxu0 0.0
  %453 = vmatpush1.msra.mxu0 0.0
  %454 = vmatprep.subr.mxu0 0.0
  %455 = vmatpush1.msra.mxu0 0.0
  %456 = vmatprep.subr.mxu0 0.0
  %457 = vmatpush1.msra.mxu0 0.0
  %458 = vmatprep.subr.mxu0 0.0
  %459 = vmatpush1.msra.mxu0 0.0
  %460 = vmatprep.subr.mxu0 0.0
  %461 = vmatpush1.msra.mxu0 0.0
  %462 = vmatprep.subr.mxu0 0.0
  %463 = vmatpush1.msra.mxu0 0.0
  %464 = vmatprep.subr.mxu0 0.0
  %465 = vmatpush1.msra.mxu0 0.0
  %466 = vmatprep.subr.mxu0 0.0
  %467 = vmatpush1.msra.mxu0 0.0
  %468 = vmatprep.subr.mxu0 0.0
  %469 = vmatpush1.msra.mxu0 0.0
  %470 = vmatprep.subr.mxu0 0.0
  %471 = vmatpush1.msra.mxu0 0.0
  %472 = vmatprep.subr.mxu0 0.0
  %473 = vmatpush1.msra.mxu0 0.0
  %474 = vmatprep.subr.mxu0 0.0
  %475 = vmatpush1.msra.mxu0 0.0
  %476 = vmatprep.subr.mxu0 0.0
  %477 = vmatpush1.msra.mxu0 0.0
  %478 = vmatprep.subr.mxu0 0.0
  %479 = vmatpush1.msra.mxu0 0.0
  %480 = vmatprep.subr.mxu0 0.0
  %481 = vmatpush1.msra.mxu0 0.0
  %482 = vmatprep.subr.mxu0 0.0
  %483 = vmatpush1.msra.mxu0 0.0
  %484 = vmatprep.subr.mxu0 0.0
  %485 = vmatpush1.msra.mxu0 0.0
  %486 = vmatprep.subr.mxu0 0.0
  %487 = vmatpush1.msra.mxu0 0.0
  %488 = vmatprep.subr.mxu0 0.0
  %489 = vmatpush1.msra.mxu0 0.0
  %490 = vmatprep.subr.mxu0 0.0
  %491 = vmatpush1.msra.mxu0 0.0
  %492 = vmatprep.subr.mxu0 0.0
  %493 = vmatpush1.msra.mxu0 0.0
  %494 = vmatprep.subr.mxu0 0.0
  %495 = vmatpush1.msra.mxu0 0.0
  %496 = vmatprep.subr.mxu0 0.0
  %497 = vmatpush1.msra.mxu0 0.0
  %498 = vmatprep.mubr.f32.mxu0 0.0
  %499 = vmatmul.mubr.f32.gmra.mrb[0].mxu0 %v432
  %v500 = vpop.f32.mrb[0].mxu0
  %v501 = vadd.f32 0.0, %v500
  %v502 = vpop.f32.mrb[0].mxu0
  %503 = vdwg.mxu0
  %v504 = vadd.f32 %v428, %v501
  %v505 = vxor.u32 %v504, 2147483648
  %v506 = vmul.f32 %v505, 1.442695
  %v507 = vpow.pop %v506
  %v508 = vadd.f32 %v507, 1.0
  %v509 = vrcp.pop %v508
  %v510 = vmul.f32 1.0, %v509
  %v511 = vtanh.pop %v504
  %v512 = vmul.f32 %v510, %v420
  %514 = vrot.lane.b32.xlu0 %v511, 64
  %v515 = vpop.permute.xlu0 %514
  %v517 = vmul.f32 %v510, %v515
  %519 = vrot.lane.b32.xlu0 %v517, 32
  %v520 = vpop.permute.xlu0 %519
  %v522 = vadd.f32 %v512, %v520
  %v523 = vtanh.pop %v522
  %525 = vrot.lane.b32.xlu0 %v523, 64
  %v526 = vpop.permute.xlu0 %525
  %v528 = vmul.f32 %v510, %v526
  %s529 = scalar_lea.vmem %s0, 40
  %v530 = vld [vmem:[%s529] sm:$0xff]
  %532 = vrot.lane.b32.xlu0 %v528, 32
  %v533 = vpop.permute.xlu0 %532
  %v534 = vsel %vm22, %v533, 0
  %536 = vmatprep.subr.mxu0 0.0
  %537 = vmatpush1.msra.mxu0 %v17
  %538 = vmatprep.subr.mxu0 0.0
  %539 = vmatpush1.msra.mxu0 %v18
  %540 = vmatprep.subr.mxu0 0.0
  %541 = vmatpush1.msra.mxu0 %v19
  %542 = vmatprep.subr.mxu0 0.0
  %543 = vmatpush1.msra.mxu0 %v20
  %544 = vmatprep.subr.mxu0 0.0
  %545 = vmatpush1.msra.mxu0 0.0
  %546 = vmatprep.subr.mxu0 0.0
  %547 = vmatpush1.msra.mxu0 0.0
  %548 = vmatprep.subr.mxu0 0.0
  %549 = vmatpush1.msra.mxu0 0.0
  %550 = vmatprep.subr.mxu0 0.0
  %551 = vmatpush1.msra.mxu0 0.0
  %552 = vmatprep.subr.mxu0 0.0
  %553 = vmatpush1.msra.mxu0 0.0
  %554 = vmatprep.subr.mxu0 0.0
  %555 = vmatpush1.msra.mxu0 0.0
  %556 = vmatprep.subr.mxu0 0.0
  %557 = vmatpush1.msra.mxu0 0.0
  %558 = vmatprep.subr.mxu0 0.0
  %559 = vmatpush1.msra.mxu0 0.0
  %560 = vmatprep.subr.mxu0 0.0
  %561 = vmatpush1.msra.mxu0 0.0
  %562 = vmatprep.subr.mxu0 0.0
  %563 = vmatpush1.msra.mxu0 0.0
  %564 = vmatprep.subr.mxu0 0.0
  %565 = vmatpush1.msra.mxu0 0.0
  %566 = vmatprep.subr.mxu0 0.0
  %567 = vmatpush1.msra.mxu0 0.0
  %568 = vmatprep.subr.mxu0 0.0
  %569 = vmatpush1.msra.mxu0 0.0
  %570 = vmatprep.subr.mxu0 0.0
  %571 = vmatpush1.msra.mxu0 0.0
  %572 = vmatprep.subr.mxu0 0.0
  %573 = vmatpush1.msra.mxu0 0.0
  %574 = vmatprep.subr.mxu0 0.0
  %575 = vmatpush1.msra.mxu0 0.0
  %576 = vmatprep.subr.mxu0 0.0
  %577 = vmatpush1.msra.mxu0 0.0
  %578 = vmatprep.subr.mxu0 0.0
  %579 = vmatpush1.msra.mxu0 0.0
  %580 = vmatprep.subr.mxu0 0.0
  %581 = vmatpush1.msra.mxu0 0.0
  %582 = vmatprep.subr.mxu0 0.0
  %583 = vmatpush1.msra.mxu0 0.0
  %584 = vmatprep.subr.mxu0 0.0
  %585 = vmatpush1.msra.mxu0 0.0
  %586 = vmatprep.subr.mxu0 0.0
  %587 = vmatpush1.msra.mxu0 0.0
  %588 = vmatprep.subr.mxu0 0.0
  %589 = vmatpush1.msra.mxu0 0.0
  %590 = vmatprep.subr.mxu0 0.0
  %591 = vmatpush1.msra.mxu0 0.0
  %592 = vmatprep.subr.mxu0 0.0
  %593 = vmatpush1.msra.mxu0 0.0
  %594 = vmatprep.subr.mxu0 0.0
  %595 = vmatpush1.msra.mxu0 0.0
  %596 = vmatprep.subr.mxu0 0.0
  %597 = vmatpush1.msra.mxu0 0.0
  %598 = vmatprep.subr.mxu0 0.0
  %599 = vmatpush1.msra.mxu0 0.0
  %600 = vmatprep.mubr.f32.mxu0 0.0
  %601 = vmatmul.mubr.f32.gmra.mrb[0].mxu0 %v534
  %v602 = vpop.f32.mrb[0].mxu0
  %v603 = vadd.f32 0.0, %v602
  %v604 = vpop.f32.mrb[0].mxu0
  %605 = vdwg.mxu0
  %v606 = vadd.f32 %v530, %v603
  %v607 = vxor.u32 %v606, 2147483648
  %v608 = vmul.f32 %v607, 1.442695
  %v609 = vpow.pop %v608
  %v610 = vadd.f32 %v609, 1.0
  %v611 = vrcp.pop %v610
  %v612 = vmul.f32 1.0, %v611
  %v613 = vtanh.pop %v606
  %v614 = vmul.f32 %v612, %v522
  %616 = vrot.lane.b32.xlu0 %v613, 64
  %v617 = vpop.permute.xlu0 %616
  %v619 = vmul.f32 %v612, %v617
  %621 = vrot.lane.b32.xlu0 %v619, 32
  %v622 = vpop.permute.xlu0 %621
  %v624 = vadd.f32 %v614, %v622
  %v625 = vtanh.pop %v624
  %627 = vrot.lane.b32.xlu0 %v625, 64
  %v628 = vpop.permute.xlu0 %627
  %v630 = vmul.f32 %v612, %v628
  %s631 = scalar_lea.vmem %s0, 48
  %v632 = vld [vmem:[%s631] sm:$0xff]
  %634 = vrot.lane.b32.xlu0 %v630, 32
  %v635 = vpop.permute.xlu0 %634
  %v636 = vsel %vm22, %v635, 0
  %638 = vmatprep.subr.mxu0 0.0
  %639 = vmatpush1.msra.mxu0 %v17
  %640 = vmatprep.subr.mxu0 0.0
  %641 = vmatpush1.msra.mxu0 %v18
  %642 = vmatprep.subr.mxu0 0.0
  %643 = vmatpush1.msra.mxu0 %v19
  %644 = vmatprep.subr.mxu0 0.0
  %645 = vmatpush1.msra.mxu0 %v20
  %646 = vmatprep.subr.mxu0 0.0
  %647 = vmatpush1.msra.mxu0 0.0
  %648 = vmatprep.subr.mxu0 0.0
  %649 = vmatpush1.msra.mxu0 0.0
  %650 = vmatprep.subr.mxu0 0.0
  %651 = vmatpush1.msra.mxu0 0.0
  %652 = vmatprep.subr.mxu0 0.0
  %653 = vmatpush1.msra.mxu0 0.0
  %654 = vmatprep.subr.mxu0 0.0
  %655 = vmatpush1.msra.mxu0 0.0
  %656 = vmatprep.subr.mxu0 0.0
  %657 = vmatpush1.msra.mxu0 0.0
  %658 = vmatprep.subr.mxu0 0.0
  %659 = vmatpush1.msra.mxu0 0.0
  %660 = vmatprep.subr.mxu0 0.0
  %661 = vmatpush1.msra.mxu0 0.0
  %662 = vmatprep.subr.mxu0 0.0
  %663 = vmatpush1.msra.mxu0 0.0
  %664 = vmatprep.subr.mxu0 0.0
  %665 = vmatpush1.msra.mxu0 0.0
  %666 = vmatprep.subr.mxu0 0.0
  %667 = vmatpush1.msra.mxu0 0.0
  %668 = vmatprep.subr.mxu0 0.0
  %669 = vmatpush1.msra.mxu0 0.0
  %670 = vmatprep.subr.mxu0 0.0
  %671 = vmatpush1.msra.mxu0 0.0
  %672 = vmatprep.subr.mxu0 0.0
  %673 = vmatpush1.msra.mxu0 0.0
  %674 = vmatprep.subr.mxu0 0.0
  %675 = vmatpush1.msra.mxu0 0.0
  %676 = vmatprep.subr.mxu0 0.0
  %677 = vmatpush1.msra.mxu0 0.0
  %678 = vmatprep.subr.mxu0 0.0
  %679 = vmatpush1.msra.mxu0 0.0
  %680 = vmatprep.subr.mxu0 0.0
  %681 = vmatpush1.msra.mxu0 0.0
  %682 = vmatprep.subr.mxu0 0.0
  %683 = vmatpush1.msra.mxu0 0.0
  %684 = vmatprep.subr.mxu0 0.0
  %685 = vmatpush1.msra.mxu0 0.0
  %686 = vmatprep.subr.mxu0 0.0
  %687 = vmatpush1.msra.mxu0 0.0
  %688 = vmatprep.subr.mxu0 0.0
  %689 = vmatpush1.msra.mxu0 0.0
  %690 = vmatprep.subr.mxu0 0.0
  %691 = vmatpush1.msra.mxu0 0.0
  %692 = vmatprep.subr.mxu0 0.0
  %693 = vmatpush1.msra.mxu0 0.0
  %694 = vmatprep.subr.mxu0 0.0
  %695 = vmatpush1.msra.mxu0 0.0
  %696 = vmatprep.subr.mxu0 0.0
  %697 = vmatpush1.msra.mxu0 0.0
  %698 = vmatprep.subr.mxu0 0.0
  %699 = vmatpush1.msra.mxu0 0.0
  %700 = vmatprep.subr.mxu0 0.0
  %701 = vmatpush1.msra.mxu0 0.0
  %702 = vmatprep.mubr.f32.mxu0 0.0
  %703 = vmatmul.mubr.f32.gmra.mrb[0].mxu0 %v636
  %v704 = vpop.f32.mrb[0].mxu0
  %v705 = vadd.f32 0.0, %v704
  %v706 = vpop.f32.mrb[0].mxu0
  %707 = vdwg.mxu0
  %v708 = vadd.f32 %v632, %v705
  %v709 = vxor.u32 %v708, 2147483648
  %v710 = vmul.f32 %v709, 1.442695
  %v711 = vpow.pop %v710
  %v712 = vadd.f32 %v711, 1.0
  %v713 = vrcp.pop %v712
  %v714 = vmul.f32 1.0, %v713
  %v715 = vtanh.pop %v708
  %v716 = vmul.f32 %v714, %v624
  %718 = vrot.lane.b32.xlu0 %v715, 64
  %v719 = vpop.permute.xlu0 %718
  %v721 = vmul.f32 %v714, %v719
  %723 = vrot.lane.b32.xlu0 %v721, 32
  %v724 = vpop.permute.xlu0 %723
  %v726 = vadd.f32 %v716, %v724
  %v727 = vtanh.pop %v726
  %729 = vrot.lane.b32.xlu0 %v727, 64
  %v730 = vpop.permute.xlu0 %729
  %v732 = vmul.f32 %v714, %v730
  %s733 = scalar_lea.vmem %s0, 56
  %v734 = vld [vmem:[%s733] sm:$0xff]
  %736 = vrot.lane.b32.xlu0 %v732, 32
  %v737 = vpop.permute.xlu0 %736
  %v738 = vsel %vm22, %v737, 0
  %740 = vmatprep.subr.mxu0 0.0
  %741 = vmatpush1.msra.mxu0 %v17
  %742 = vmatprep.subr.mxu0 0.0
  %743 = vmatpush1.msra.mxu0 %v18
  %744 = vmatprep.subr.mxu0 0.0
  %745 = vmatpush1.msra.mxu0 %v19
  %746 = vmatprep.subr.mxu0 0.0
  %747 = vmatpush1.msra.mxu0 %v20
  %748 = vmatprep.subr.mxu0 0.0
  %749 = vmatpush1.msra.mxu0 0.0
  %750 = vmatprep.subr.mxu0 0.0
  %751 = vmatpush1.msra.mxu0 0.0
  %752 = vmatprep.subr.mxu0 0.0
  %753 = vmatpush1.msra.mxu0 0.0
  %754 = vmatprep.subr.mxu0 0.0
  %755 = vmatpush1.msra.mxu0 0.0
  %756 = vmatprep.subr.mxu0 0.0
  %757 = vmatpush1.msra.mxu0 0.0
  %758 = vmatprep.subr.mxu0 0.0
  %759 = vmatpush1.msra.mxu0 0.0
  %760 = vmatprep.subr.mxu0 0.0
  %761 = vmatpush1.msra.mxu0 0.0
  %762 = vmatprep.subr.mxu0 0.0
  %763 = vmatpush1.msra.mxu0 0.0
  %764 = vmatprep.subr.mxu0 0.0
  %765 = vmatpush1.msra.mxu0 0.0
  %766 = vmatprep.subr.mxu0 0.0
  %767 = vmatpush1.msra.mxu0 0.0
  %768 = vmatprep.subr.mxu0 0.0
  %769 = vmatpush1.msra.mxu0 0.0
  %770 = vmatprep.subr.mxu0 0.0
  %771 = vmatpush1.msra.mxu0 0.0
  %772 = vmatprep.subr.mxu0 0.0
  %773 = vmatpush1.msra.mxu0 0.0
  %774 = vmatprep.subr.mxu0 0.0
  %775 = vmatpush1.msra.mxu0 0.0
  %776 = vmatprep.subr.mxu0 0.0
  %777 = vmatpush1.msra.mxu0 0.0
  %778 = vmatprep.subr.mxu0 0.0
  %779 = vmatpush1.msra.mxu0 0.0
  %780 = vmatprep.subr.mxu0 0.0
  %781 = vmatpush1.msra.mxu0 0.0
  %782 = vmatprep.subr.mxu0 0.0
  %783 = vmatpush1.msra.mxu0 0.0
  %784 = vmatprep.subr.mxu0 0.0
  %785 = vmatpush1.msra.mxu0 0.0
  %786 = vmatprep.subr.mxu0 0.0
  %787 = vmatpush1.msra.mxu0 0.0
  %788 = vmatprep.subr.mxu0 0.0
  %789 = vmatpush1.msra.mxu0 0.0
  %790 = vmatprep.subr.mxu0 0.0
  %791 = vmatpush1.msra.mxu0 0.0
  %792 = vmatprep.subr.mxu0 0.0
  %793 = vmatpush1.msra.mxu0 0.0
  %794 = vmatprep.subr.mxu0 0.0
  %795 = vmatpush1.msra.mxu0 0.0
  %796 = vmatprep.subr.mxu0 0.0
  %797 = vmatpush1.msra.mxu0 0.0
  %798 = vmatprep.subr.mxu0 0.0
  %799 = vmatpush1.msra.mxu0 0.0
  %800 = vmatprep.subr.mxu0 0.0
  %801 = vmatpush1.msra.mxu0 0.0
  %802 = vmatprep.subr.mxu0 0.0
  %803 = vmatpush1.msra.mxu0 0.0
  %804 = vmatprep.mubr.f32.mxu0 0.0
  %805 = vmatmul.mubr.f32.gmra.mrb[0].mxu0 %v738
  %v806 = vpop.f32.mrb[0].mxu0
  %v807 = vadd.f32 0.0, %v806
  %v808 = vpop.f32.mrb[0].mxu0
  %809 = vdwg.mxu0
  %v810 = vadd.f32 %v734, %v807
  %v811 = vxor.u32 %v810, 2147483648
  %v812 = vmul.f32 %v811, 1.442695
  %v813 = vpow.pop %v812
  %v814 = vadd.f32 %v813, 1.0
  %v815 = vrcp.pop %v814
  %v816 = vmul.f32 1.0, %v815
  %v817 = vtanh.pop %v810
  %v818 = vmul.f32 %v816, %v726
  %820 = vrot.lane.b32.xlu0 %v817, 64
  %v821 = vpop.permute.xlu0 %820
  %v823 = vmul.f32 %v816, %v821
  %825 = vrot.lane.b32.xlu0 %v823, 32
  %v826 = vpop.permute.xlu0 %825
  %v828 = vadd.f32 %v818, %v826
  %v829 = vtanh.pop %v828
  %831 = vrot.lane.b32.xlu0 %v829, 64
  %v832 = vpop.permute.xlu0 %831
  %v834 = vmul.f32 %v816, %v832
  %v835 = vld [vmem:[%s2] sm:$0xff]
  %v836 = vld [vmem:[%s2 + $0x8] sm:$0xff]
  %v837 = vld [vmem:[%s2 + $0x10] sm:$0xff]
  %v838 = vld [vmem:[%s2 + $0x18] sm:$0xff]
  %v839 = vld [vmem:[%s3] sm:$0x1]
  %v841 = vlaneseq
  %v842 = vshrl.u32 %v841, 7
  %v843 = vsub.s32 0, %v842
  %v844 = vrot.slane %v839, %v843
  %847 = vrot.lane.b32.xlu0 %v834, 32
  %v848 = vpop.permute.xlu0 %847
  %v849 = vsel %vm22, %v848, 0
  %851 = vmatprep.subr.mxu0 0.0
  %852 = vmatpush1.msra.mxu0 %v835
  %853 = vmatprep.subr.mxu0 0.0
  %854 = vmatpush1.msra.mxu0 %v836
  %855 = vmatprep.subr.mxu0 0.0
  %856 = vmatpush1.msra.mxu0 %v837
  %857 = vmatprep.subr.mxu0 0.0
  %858 = vmatpush1.msra.mxu0 %v838
  %859 = vmatprep.subr.mxu0 0.0
  %860 = vmatpush1.msra.mxu0 0.0
  %861 = vmatprep.subr.mxu0 0.0
  %862 = vmatpush1.msra.mxu0 0.0
  %863 = vmatprep.subr.mxu0 0.0
  %864 = vmatpush1.msra.mxu0 0.0
  %865 = vmatprep.subr.mxu0 0.0
  %866 = vmatpush1.msra.mxu0 0.0
  %867 = vmatprep.subr.mxu0 0.0
  %868 = vmatpush1.msra.mxu0 0.0
  %869 = vmatprep.subr.mxu0 0.0
  %870 = vmatpush1.msra.mxu0 0.0
  %871 = vmatprep.subr.mxu0 0.0
  %872 = vmatpush1.msra.mxu0 0.0
  %873 = vmatprep.subr.mxu0 0.0
  %874 = vmatpush1.msra.mxu0 0.0
  %875 = vmatprep.subr.mxu0 0.0
  %876 = vmatpush1.msra.mxu0 0.0
  %877 = vmatprep.subr.mxu0 0.0
  %878 = vmatpush1.msra.mxu0 0.0
  %879 = vmatprep.subr.mxu0 0.0
  %880 = vmatpush1.msra.mxu0 0.0
  %881 = vmatprep.subr.mxu0 0.0
  %882 = vmatpush1.msra.mxu0 0.0
  %883 = vmatprep.subr.mxu0 0.0
  %884 = vmatpush1.msra.mxu0 0.0
  %885 = vmatprep.subr.mxu0 0.0
  %886 = vmatpush1.msra.mxu0 0.0
  %887 = vmatprep.subr.mxu0 0.0
  %888 = vmatpush1.msra.mxu0 0.0
  %889 = vmatprep.subr.mxu0 0.0
  %890 = vmatpush1.msra.mxu0 0.0
  %891 = vmatprep.subr.mxu0 0.0
  %892 = vmatpush1.msra.mxu0 0.0
  %893 = vmatprep.subr.mxu0 0.0
  %894 = vmatpush1.msra.mxu0 0.0
  %895 = vmatprep.subr.mxu0 0.0
  %896 = vmatpush1.msra.mxu0 0.0
  %897 = vmatprep.subr.mxu0 0.0
  %898 = vmatpush1.msra.mxu0 0.0
  %899 = vmatprep.subr.mxu0 0.0
  %900 = vmatpush1.msra.mxu0 0.0
  %901 = vmatprep.subr.mxu0 0.0
  %902 = vmatpush1.msra.mxu0 0.0
  %903 = vmatprep.subr.mxu0 0.0
  %904 = vmatpush1.msra.mxu0 0.0
  %905 = vmatprep.subr.mxu0 0.0
  %906 = vmatpush1.msra.mxu0 0.0
  %907 = vmatprep.subr.mxu0 0.0
  %908 = vmatpush1.msra.mxu0 0.0
  %909 = vmatprep.subr.mxu0 0.0
  %910 = vmatpush1.msra.mxu0 0.0
  %911 = vmatprep.subr.mxu0 0.0
  %912 = vmatpush1.msra.mxu0 0.0
  %913 = vmatprep.subr.mxu0 0.0
  %914 = vmatpush1.msra.mxu0 0.0
  %915 = vmatprep.mubr.f32.mxu0 0.0
  %916 = vmatmul.mubr.f32.gmra.mrb[0].mxu0 %v849
  %v917 = vpop.f32.mrb[0].mxu0
  %v918 = vadd.f32 %v844, %v917
  %v919 = vpop.f32.mrb[0].mxu0
  %920 = vdwg.mxu0
  %v921 = vxor.u32 %v918, 2147483648
  %v922 = vmul.f32 %v921, 1.442695
  %v923 = vpow.pop %v922
  %v924 = vadd.f32 %v923, 1.0
  %v925 = vrcp.pop %v924
  %v926 = vmul.f32 1.0, %v925
  %927 = vst [vmem:[%s4] sm:$0xff] %v926
  // Predicated region
  $region18: #{_lambda_.1} parent=0 // pred_check
    _
  $region19: #{_lambda_.1} parent=0 // pred_check_branch
    %929 = sbr.rel (0) target = $region21
  $region20: #{_lambda_.1} parent=0 // pred_region
    _
  $region21: #{_lambda_.1} parent=0 // pred_fallthru
    _
  // Predicated region
  $region22: #{_lambda_.1} parent=0 // pred_check
    _
  $region23: #{_lambda_.1} parent=0 // pred_check_branch
    %931 = sbr.rel (0) target = $region25
  $region24: #{_lambda_.1} parent=0 // pred_region
    _
  $region25: #{_lambda_.1} parent=0 // pred_fallthru
    _

</llo_original>
